<compile_context>
chip_gen: v7x
topology: tpu7x:2x2x1
jax: 0.10.0
libtpu: 0.0.40
codegen_flags: <defaults>
</compile_context>

<pallas_src>
import functools
import math

import jax
import jax.numpy as jnp
from jax.experimental import pallas as pl
from jax.experimental.pallas import tpu as pltpu


_CHUNK = 2048  # lanes processed per sub-chunk (keeps h1/h2 ~200 KB each)


def _round_up(a, b):
    return (a + b - 1) // b * b


def _fcn_kernel(xT_ref, w1_ref, b1_ref, w2_ref, b2_ref, w3_ref, b3_ref, o_ref,
                *, chunk):
    # xT_ref: (9, TN) bf16, batch on lanes.   o_ref: (2, TN) f32.
    w1 = w1_ref[...]   # (18, 9)  bf16
    w2 = w2_ref[...]   # (18, 18) bf16
    w3 = w3_ref[...]   # (2, 18)  bf16
    b1 = b1_ref[...]   # (18, 1)  f32
    b2 = b2_ref[...]   # (18, 1)  f32
    b3 = b3_ref[...]   # (2, 1)   f32

    tn = xT_ref.shape[1]
    # Statically-unrolled sub-chunk loop: all slice offsets are Python ints,
    # so there is no dynamic indexing on the lane (minor) dimension.
    for j in range(0, tn, chunk):
        x = xT_ref[:, pl.ds(j, chunk)]                                   # (9, chunk) bf16
        # Layer 1: f32 MXU accumulation; bias + ReLU in f32.
        h1 = jnp.dot(w1, x, preferred_element_type=jnp.float32)          # (18, chunk)
        h1 = jnp.maximum(h1 + b1, 0.0)
        # Layer 2
        h2 = jnp.dot(w2, h1.astype(w2.dtype), preferred_element_type=jnp.float32)
        h2 = jnp.maximum(h2 + b2, 0.0)
        # Layer 3 (no activation)
        y = jnp.dot(w3, h2.astype(w3.dtype), preferred_element_type=jnp.float32)
        o_ref[:, pl.ds(j, chunk)] = (y + b3).astype(o_ref.dtype)


@functools.partial(jax.jit, static_argnames=("tn_max",))
def fcn_forward(x, params, *, tn_max=32768):
    """Forward pass of FCN.  x: any shape with prod(shape) % 9 == 0
    (matches torch's x.view(-1, 9)).  Returns (N, 2) float32."""
    w1, b1, w2, b2, w3, b3 = params
    x2d = x.reshape(-1, 9)
    n = x2d.shape[0]

    # Feature-major + bf16 cast, fused into one XLA pass under jit.
    xT = x2d.T.astype(jnp.bfloat16)                  # (9, N), batch on lanes
    w1b = w1.astype(jnp.bfloat16)
    w2b = w2.astype(jnp.bfloat16)
    w3b = w3.astype(jnp.bfloat16)

    # Batch tile: large enough to amortize per-step overhead, multiple of the
    # inner chunk, and for large N capped at ~half the batch so the grid has
    # at least 2 steps (v7x megacore sharding).
    n128 = _round_up(n, 128)
    if n128 <= _CHUNK:
        tn = n128
    else:
        half = _round_up(pl.cdiv(n128, 2), _CHUNK)
        tn = min(_round_up(tn_max, _CHUNK), half)
    chunk = min(_CHUNK, tn)
    grid = (pl.cdiv(n, tn),)          # ragged last block handled by Pallas

    batch_spec = lambda shape: pl.BlockSpec(shape, lambda i: (0, i))
    resident = lambda shape: pl.BlockSpec(shape, lambda i: (0, 0))

    flops = 2 * (9 * 18 + 18 * 18 + 18 * 2) * n
    bytes_accessed = (9 * 2 + 2 * 4) * n \
        + 2 * (18 * 9 + 18 * 18 + 2 * 18) + 4 * (18 + 18 + 2)

    out_t = pl.pallas_call(
        functools.partial(_fcn_kernel, chunk=chunk),
        out_shape=jax.ShapeDtypeStruct((2, n), jnp.float32),
        grid=grid,
        in_specs=[
            batch_spec((9, tn)),                       # activations: new tile per step
            resident((18, 9)),  resident((18, 1)),     # layer-1 params (VMEM-resident)
            resident((18, 18)), resident((18, 1)),     # layer-2 params
            resident((2, 18)),  resident((2, 1)),      # layer-3 params
        ],
        out_specs=batch_spec((2, tn)),                 # lane-dense output tile
        compiler_params=pltpu.CompilerParams(
            dimension_semantics=("parallel",),         # shard batch tiles across TCs
            vmem_limit_bytes=32 * 1024 * 1024,         # safe on v5e/v6e/v7x; usage ~<10 MB
        ),
        cost_estimate=pl.CostEstimate(
            flops=flops, transcendentals=0, bytes_accessed=bytes_accessed
        ),
    )(xT, w1b, b1, w2b, b2, w3b, b3)

    return out_t.T  # (N, 2) — tiny 2-row transpose


def init_params(key):
    """Xavier-uniform weights (zero biases), stored PyTorch-style as (out, in)."""
    def xavier(key, fan_out, fan_in):
        limit = math.sqrt(6.0 / (fan_in + fan_out))
        return jax.random.uniform(
            key, (fan_out, fan_in), jnp.float32, minval=-limit, maxval=limit
        )

    k1, k2, k3 = jax.random.split(key, 3)
    w1 = xavier(k1, 18, 9)
    b1 = jnp.zeros((18, 1), jnp.float32)
    w2 = xavier(k2, 18, 18)
    b2 = jnp.zeros((18, 1), jnp.float32)
    w3 = xavier(k3, 2, 18)
    b3 = jnp.zeros((2, 1), jnp.float32)
    return (w1, b1, w2, b2, w3, b3)


def _reference(x, params):
    """Pure-JAX reference using the same bf16-operand / f32-accumulation math."""
    w1, b1, w2, b2, w3, b3 = params
    bf = jnp.bfloat16
    h = x.reshape(-1, 9).astype(bf)
    h = jnp.maximum(
        jnp.dot(h, w1.astype(bf).T, preferred_element_type=jnp.float32) + b1.T, 0.0)
    h = jnp.maximum(
        jnp.dot(h.astype(bf), w2.astype(bf).T, preferred_element_type=jnp.float32) + b2.T, 0.0)
    return jnp.dot(h.astype(bf), w3.astype(bf).T, preferred_element_type=jnp.float32) + b3.T


if __name__ == "__main__":
    key = jax.random.PRNGKey(0)
    pkey, xkey = jax.random.split(key)
    params = init_params(pkey)

    # Small input; torch forward does x.view(-1, 9): 8 samples of 9 features,
    # given as (8, 3, 3).
    x = jax.random.normal(xkey, (8, 3, 3), jnp.float32)

    out = fcn_forward(x, params)
    out = jax.block_until_ready(out)

    ref = _reference(x, params)
    assert out.shape == (8, 2), out.shape
    assert jnp.allclose(out, ref, atol=1e-2, rtol=1e-2), "mismatch vs reference"

    print("KERNEL_OK")
</pallas_src>

<mosaic_0001>
module attributes {stable_mosaic.version = 11 : i64} {
  func.func @_fcn_kernel(%arg0: i32, %arg1: memref<9x128xbf16, #tpu.memory_space<vmem>>, %arg2: memref<18x9xbf16, #tpu.memory_space<vmem>>, %arg3: memref<18x1xf32, #tpu.memory_space<vmem>>, %arg4: memref<18x18xbf16, #tpu.memory_space<vmem>>, %arg5: memref<18x1xf32, #tpu.memory_space<vmem>>, %arg6: memref<2x18xbf16, #tpu.memory_space<vmem>>, %arg7: memref<2x1xf32, #tpu.memory_space<vmem>>, %arg8: memref<2x128xf32, #tpu.memory_space<vmem>>) attributes {dimension_semantics = [#tpu.dimension_semantics<parallel>], iteration_bounds = array<i64: 1>, scalar_prefetch = 0 : i64, scratch_operands = 0 : i64, tpu.core_type = #tpu.core_type<tc>, window_params = [{transform_indices = @transform_0, window_bounds = array<i64: 9, 128>}, {pipeline_mode = #tpu.pipeline_mode<synchronous>, transform_indices = @transform_1, window_bounds = array<i64: 18, 9>}, {pipeline_mode = #tpu.pipeline_mode<synchronous>, transform_indices = @transform_2, window_bounds = array<i64: 18, 1>}, {pipeline_mode = #tpu.pipeline_mode<synchronous>, transform_indices = @transform_3, window_bounds = array<i64: 18, 18>}, {pipeline_mode = #tpu.pipeline_mode<synchronous>, transform_indices = @transform_4, window_bounds = array<i64: 18, 1>}, {pipeline_mode = #tpu.pipeline_mode<synchronous>, transform_indices = @transform_5, window_bounds = array<i64: 2, 18>}, {pipeline_mode = #tpu.pipeline_mode<synchronous>, transform_indices = @transform_6, window_bounds = array<i64: 2, 1>}, {transform_indices = @transform_7, window_bounds = array<i64: 2, 128>}]} {
    %c0 = arith.constant 0 : index
    %c0_0 = arith.constant 0 : index
    %0 = vector.load %arg2[%c0, %c0_0] : memref<18x9xbf16, #tpu.memory_space<vmem>>, vector<18x9xbf16>
    %c0_1 = arith.constant 0 : index
    %c0_2 = arith.constant 0 : index
    %1 = vector.load %arg4[%c0_1, %c0_2] : memref<18x18xbf16, #tpu.memory_space<vmem>>, vector<18x18xbf16>
    %c0_3 = arith.constant 0 : index
    %c0_4 = arith.constant 0 : index
    %2 = vector.load %arg6[%c0_3, %c0_4] : memref<2x18xbf16, #tpu.memory_space<vmem>>, vector<2x18xbf16>
    %c0_5 = arith.constant 0 : index
    %c0_6 = arith.constant 0 : index
    %3 = vector.load %arg3[%c0_5, %c0_6] : memref<18x1xf32, #tpu.memory_space<vmem>>, vector<18x1xf32>
    %c0_7 = arith.constant 0 : index
    %c0_8 = arith.constant 0 : index
    %4 = vector.load %arg5[%c0_7, %c0_8] : memref<18x1xf32, #tpu.memory_space<vmem>>, vector<18x1xf32>
    %c0_9 = arith.constant 0 : index
    %c0_10 = arith.constant 0 : index
    %5 = vector.load %arg7[%c0_9, %c0_10] : memref<2x1xf32, #tpu.memory_space<vmem>>, vector<2x1xf32>
    %c0_11 = arith.constant 0 : index
    %c0_12 = arith.constant 0 : index
    %6 = vector.load %arg1[%c0_11, %c0_12] : memref<9x128xbf16, #tpu.memory_space<vmem>>, vector<9x128xbf16>
    %cst = arith.constant dense<0.000000e+00> : vector<18x128xf32>
    %7 = tpu.matmul %0, %6, %cst {dimension_numbers = #tpu.dot_dimension_numbers<[1], [0], [0], [1], [0, 0, 1, 1], [], []>} : vector<18x9xbf16>, vector<9x128xbf16>, vector<18x128xf32> -> vector<18x128xf32>
    %8 = vector.broadcast %3 : vector<18x1xf32> to vector<18x128xf32>
    %9 = arith.addf %7, %8 : vector<18x128xf32>
    %cst_13 = arith.constant 0.000000e+00 : f32
    %10 = vector.broadcast %cst_13 : f32 to vector<18x128xf32>
    %11 = arith.maximumf %9, %10 : vector<18x128xf32>
    %12 = arith.truncf %11 : vector<18x128xf32> to vector<18x128xbf16>
    %cst_14 = arith.constant dense<0.000000e+00> : vector<18x128xf32>
    %13 = tpu.matmul %1, %12, %cst_14 {dimension_numbers = #tpu.dot_dimension_numbers<[1], [0], [0], [1], [0, 0, 1, 1], [], []>} : vector<18x18xbf16>, vector<18x128xbf16>, vector<18x128xf32> -> vector<18x128xf32>
    %14 = vector.broadcast %4 : vector<18x1xf32> to vector<18x128xf32>
    %15 = arith.addf %13, %14 : vector<18x128xf32>
    %cst_15 = arith.constant 0.000000e+00 : f32
    %16 = vector.broadcast %cst_15 : f32 to vector<18x128xf32>
    %17 = arith.maximumf %15, %16 : vector<18x128xf32>
    %18 = arith.truncf %17 : vector<18x128xf32> to vector<18x128xbf16>
    %cst_16 = arith.constant dense<0.000000e+00> : vector<2x128xf32>
    %19 = tpu.matmul %2, %18, %cst_16 {dimension_numbers = #tpu.dot_dimension_numbers<[1], [0], [0], [1], [0, 0, 1, 1], [], []>} : vector<2x18xbf16>, vector<18x128xbf16>, vector<2x128xf32> -> vector<2x128xf32>
    %20 = vector.broadcast %5 : vector<2x1xf32> to vector<2x128xf32>
    %21 = arith.addf %19, %20 : vector<2x128xf32>
    %c0_17 = arith.constant 0 : index
    %c0_18 = arith.constant 0 : index
    %22 = vector.load %arg8[%c0_17, %c0_18] : memref<2x128xf32, #tpu.memory_space<vmem>>, vector<2x128xf32>
    tpu.vector_store %arg8[%c0_17, %c0_18], %21 {strides = array<i32>} : memref<2x128xf32, #tpu.memory_space<vmem>>, vector<2x128xf32>,
    return
  }
  func.func @transform_0(%arg0: i32) -> (i32, i32) {
    %c0_i32 = arith.constant 0 : i32
    %c0_i32_0 = arith.constant 0 : i32
    return %c0_i32, %arg0 : i32, i32
  }
  func.func @transform_1(%arg0: i32) -> (i32, i32) {
    %c0_i32 = arith.constant 0 : i32
    %c0_i32_0 = arith.constant 0 : i32
    %c0_i32_1 = arith.constant 0 : i32
    return %c0_i32, %c0_i32_0 : i32, i32
  }
  func.func @transform_2(%arg0: i32) -> (i32, i32) {
    %c0_i32 = arith.constant 0 : i32
    %c0_i32_0 = arith.constant 0 : i32
    %c0_i32_1 = arith.constant 0 : i32
    return %c0_i32, %c0_i32_0 : i32, i32
  }
  func.func @transform_3(%arg0: i32) -> (i32, i32) {
    %c0_i32 = arith.constant 0 : i32
    %c0_i32_0 = arith.constant 0 : i32
    %c0_i32_1 = arith.constant 0 : i32
    return %c0_i32, %c0_i32_0 : i32, i32
  }
  func.func @transform_4(%arg0: i32) -> (i32, i32) {
    %c0_i32 = arith.constant 0 : i32
    %c0_i32_0 = arith.constant 0 : i32
    %c0_i32_1 = arith.constant 0 : i32
    return %c0_i32, %c0_i32_0 : i32, i32
  }
  func.func @transform_5(%arg0: i32) -> (i32, i32) {
    %c0_i32 = arith.constant 0 : i32
    %c0_i32_0 = arith.constant 0 : i32
    %c0_i32_1 = arith.constant 0 : i32
    return %c0_i32, %c0_i32_0 : i32, i32
  }
  func.func @transform_6(%arg0: i32) -> (i32, i32) {
    %c0_i32 = arith.constant 0 : i32
    %c0_i32_0 = arith.constant 0 : i32
    %c0_i32_1 = arith.constant 0 : i32
    return %c0_i32, %c0_i32_0 : i32, i32
  }
  func.func @transform_7(%arg0: i32) -> (i32, i32) {
    %c0_i32 = arith.constant 0 : i32
    %c0_i32_0 = arith.constant 0 : i32
    return %c0_i32, %arg0 : i32, i32
  }
}

</mosaic_0001>

<llo_original>
// kernel: fcn_forward.1
$region0: #{fcn_forward.1}
  #allocation0 [shape = 'u32[]', space=smem, size = 0x4, offset = 0x4, fixed_abs, tag = 'smem constant byte address 0x4 - core index']
  #allocation1 [shape = 'u32[144,128]{1,0:T(1,128)}', space=vmem, size = 0x12000, scoped, tag = 'internal scratch']
  %s0 = inlined_call_operand.vmem [shape: bf16[9,8], index: 0, kind: input, shape index: {}]
  %s1 = inlined_call_operand.vmem [shape: bf16[18,9], index: 1, kind: input, shape index: {}]
  %s2 = inlined_call_operand.vmem [shape: f32[18,1], index: 2, kind: input, shape index: {}]
  %s3 = inlined_call_operand.vmem [shape: bf16[18,18], index: 3, kind: input, shape index: {}]
  %s4 = inlined_call_operand.vmem [shape: f32[18,1], index: 4, kind: input, shape index: {}]
  %s5 = inlined_call_operand.vmem [shape: bf16[2,18], index: 5, kind: input, shape index: {}]
  %s6 = inlined_call_operand.vmem [shape: f32[2,1], index: 6, kind: input, shape index: {}]
  %s7 = inlined_call_operand.hbm [shape: f32[2,8], index: 7, kind: output, shape index: {}]
  %s8 = sld [smem:[#allocation0]]
  $region38: #{fcn_forward.1} parent=0
    _
  %s10 = ssub.s32 1, %s8
  %s11 = scalar_select 0, %s10, %s8
  $region1: #{fcn_forward.1} parent=0
    #allocation2 [shape = 'u8[1024]{0}', space=vmem, size = 0x400, scoped, tag = 'output window, operand 0, single buffered']
    #allocation3 [shape = 's32[1]{0}', space=sflag, size = 0x4, scoped, tag = 'scoped memory for fcn_forward.1']
    %12 = vsyncpa [#allocation3], 0
    // Predicated region
    $region2: #{fcn_forward.1} parent=1 // pred_check
      _
    $region3: #{fcn_forward.1} parent=1 // pred_check_branch
      %14 = sbr.rel (0) target = $region5
    $region4: #{fcn_forward.1} parent=1 // pred_region
      _
    $region5: #{fcn_forward.1} parent=1 // pred_fallthru
      _
    // Predicated region
    $region6: #{fcn_forward.1} parent=1 // pred_check
      _
    $region7: #{fcn_forward.1} parent=1 // pred_check_branch
      %16 = sbr.rel (0) target = $region9
    $region8: #{fcn_forward.1} parent=1 // pred_region
      _
    $region9: #{fcn_forward.1} parent=1 // pred_fallthru
      _
    // Predicated region
    $region10: #{fcn_forward.1} parent=1 // pred_check
      _
    $region11: #{fcn_forward.1} parent=1 // pred_check_branch
      %18 = sbr.rel (0) target = $region13
    $region12: #{fcn_forward.1} parent=1 // pred_region
      _
    $region13: #{fcn_forward.1} parent=1 // pred_fallthru
      _
    // Predicated region
    $region14: #{fcn_forward.1} parent=1 // pred_check
      _
    $region15: #{fcn_forward.1} parent=1 // pred_check_branch
      %20 = sbr.rel (0) target = $region17
    $region16: #{fcn_forward.1} parent=1 // pred_region
      _
    $region17: #{fcn_forward.1} parent=1 // pred_fallthru
      _
    // Predicated region
    $region18: #{fcn_forward.1} parent=1 // pred_check
      _
    $region19: #{fcn_forward.1} parent=1 // pred_check_branch
      %22 = sbr.rel (0) target = $region21
    $region20: #{fcn_forward.1} parent=1 // pred_region
      _
    $region21: #{fcn_forward.1} parent=1 // pred_fallthru
      _
    // Predicated region
    $region22: #{fcn_forward.1} parent=1 // pred_check
      _
    $region23: #{fcn_forward.1} parent=1 // pred_check_branch
      %24 = sbr.rel (0) target = $region25
    $region24: #{fcn_forward.1} parent=1 // pred_region
      _
    $region25: #{fcn_forward.1} parent=1 // pred_fallthru
      _
    // Predicated region
    $region26: #{fcn_forward.1} parent=1 // pred_check
      _
    $region27: #{fcn_forward.1} parent=1 // pred_check_branch
      %26 = sbr.rel (0) target = $region29
    $region28: #{fcn_forward.1} parent=1 // pred_region
      _
    $region29: #{fcn_forward.1} parent=1 // pred_fallthru
      _
    %v28 = vld [vmem:[%s1] sm:$0xf]
    %v29 = vld [vmem:[%s1 + $0x4] sm:$0xf]
    %v30 = vld [vmem:[%s1 + $0x8] sm:$0x1]
    %v31 = vld [vmem:[%s3] sm:$0xf]
    %v32 = vld [vmem:[%s3 + $0x4] sm:$0xf]
    %v33 = vld [vmem:[%s3 + $0x8] sm:$0x1]
    %v34 = vld [vmem:[%s5] sm:$0x1]
    %v35 = vld [vmem:[%s2] sm:$0xff]
    %v36 = vld [vmem:[%s2 + $0x8] sm:$0xff]
    %v37 = vld [vmem:[%s2 + $0x10] sm:$0x3]
    %v38 = vld [vmem:[%s4] sm:$0xff]
    %v39 = vld [vmem:[%s4 + $0x8] sm:$0xff]
    %v40 = vld [vmem:[%s4 + $0x10] sm:$0x3]
    %v41 = vld [vmem:[%s6] sm:$0x3]
    %v42 = vld [vmem:[%s0] sm:$0xf]
    %v43 = vld [vmem:[%s0 + $0x4] sm:$0x1]
    %45 = vset.pattern.permute.xlu0 0
    %46 = vperm.xlu0 %45, %v35
    %v47 = vpop.permute.xlu0 %46
    %50 = vset.pattern.permute.xlu0 0
    %51 = vperm.xlu0 %50, %v36
    %v52 = vpop.permute.xlu0 %51
    %55 = vset.pattern.permute.xlu0 0
    %56 = vperm.xlu0 %55, %v37
    %v57 = vpop.permute.xlu0 %56
    %v62 = vunpack.c.l.b16 %v28
    %v63 = vunpack.c.l.b16 %v29
    %v64 = vunpack.c.l.b16 %v30
    %v65 = vpack.c.b16 %v63, %v62
    %v66 = vpack.c.b16 %v64, %v64
    %v69 = vunpack.c.l.b16 %v42
    %v70 = vunpack.c.l.b16 %v43
    %v71 = vpack.c.b16 %v70, %v69
    %vm72 = vcmask 72704
    %v74 = vsel %vm72, %v65, 0
    %v77 = vsel %vm72, %v66, 0
    %vm79 = vcmask 1043456
    %vm80 = vcmask 1044480
    %v81 = vsel %vm79, 4294967295, 65535
    %v82 = vsel %vm80, %v81, 0
    %v84 = vand.u32 %v71, %v82
    %86 = vmatprep.subr.bf16.mxu0 0
    %87 = vmatpush1.bf16.msra.mxu0 %v84
    %88 = vmatprep.subr.bf16.mxu0 0
    %89 = vmatpush1.bf16.msra.mxu0 0
    %90 = vmatprep.subr.bf16.mxu0 0
    %91 = vmatpush1.bf16.msra.mxu0 0
    %92 = vmatprep.subr.bf16.mxu0 0
    %93 = vmatpush1.bf16.msra.mxu0 0
    %94 = vmatprep.subr.bf16.mxu0 0
    %95 = vmatpush1.bf16.msra.mxu0 0
    %96 = vmatprep.subr.bf16.mxu0 0
    %97 = vmatpush1.bf16.msra.mxu0 0
    %98 = vmatprep.subr.bf16.mxu0 0
    %99 = vmatpush1.bf16.msra.mxu0 0
    %100 = vmatprep.subr.bf16.mxu0 0
    %101 = vmatpush1.bf16.msra.mxu0 0
    %102 = vmatprep.subr.bf16.mxu0 0
    %103 = vmatpush1.bf16.msra.mxu0 0
    %104 = vmatprep.subr.bf16.mxu0 0
    %105 = vmatpush1.bf16.msra.mxu0 0
    %106 = vmatprep.subr.bf16.mxu0 0
    %107 = vmatpush1.bf16.msra.mxu0 0
    %108 = vmatprep.subr.bf16.mxu0 0
    %109 = vmatpush1.bf16.msra.mxu0 0
    %110 = vmatprep.subr.bf16.mxu0 0
    %111 = vmatpush1.bf16.msra.mxu0 0
    %112 = vmatprep.subr.bf16.mxu0 0
    %113 = vmatpush1.bf16.msra.mxu0 0
    %114 = vmatprep.subr.bf16.mxu0 0
    %115 = vmatpush1.bf16.msra.mxu0 0
    %116 = vmatprep.subr.bf16.mxu0 0
    %117 = vmatpush1.bf16.msra.mxu0 0
    %118 = vmatprep.mubr.bf16.mxu0 0
    %119 = vmatmul.mubr.bf16.gmra.mrb[0].mxu0 %v74
    %v120 = vpop.f32.mrb[0].mxu0
    %v121 = vadd.f32 %v47, %v120
    %v122 = vpop.f32.mrb[0].mxu0
    %v123 = vpop.f32.mrb[0].mxu0
    %v124 = vadd.f32 %v52, %v123
    %v125 = vpop.f32.mrb[0].mxu0
    %126 = vmatprep.mubr.bf16.mxu0 0
    %127 = vmatmul.mubr.bf16.gmra.mrb[0].mxu0 %v77
    %v128 = vpop.f32.mrb[0].mxu0
    %v129 = vadd.f32 %v57, %v128
    %v130 = vpop.f32.mrb[0].mxu0
    %v131 = vpop.f32.mrb[0].mxu0
    %v132 = vpop.f32.mrb[0].mxu0
    %133 = vdwg.mxu0
    %v134 = vmax.f32 %v121, 0.0
    %v135 = vmax.f32 %v124, 0.0
    %v136 = vmax.f32 %v129, 0.0
    %v137 = vpack.c.bf16 %v135, %v134
    %v138 = vpack.c.bf16 %v136, %v136
    %140 = vset.pattern.permute.xlu0 0
    %141 = vperm.xlu0 %140, %v38
    %v142 = vpop.permute.xlu0 %141
    %145 = vset.pattern.permute.xlu0 0
    %146 = vperm.xlu0 %145, %v39
    %v147 = vpop.permute.xlu0 %146
    %150 = vset.pattern.permute.xlu0 0
    %151 = vperm.xlu0 %150, %v40
    %v152 = vpop.permute.xlu0 %151
    %v157 = vunpack.c.l.b16 %v31
    %v158 = vunpack.c.l.b16 %v32
    %v159 = vunpack.c.l.b16 %v33
    %v160 = vpack.c.b16 %v158, %v157
    %v161 = vpack.c.b16 %v159, %v159
    %vm162 = vcmask 146432
    %v164 = vsel %vm162, %v160, 0
    %v167 = vsel %vm162, %v161, 0
    %vm169 = vcmask 1040384
    %v171 = vsel %vm169, %v138, 0
    %173 = vmatprep.subr.bf16.mxu0 0
    %174 = vmatpush1.bf16.msra.mxu0 %v137
    %175 = vmatprep.subr.bf16.mxu0 0
    %176 = vmatpush1.bf16.msra.mxu0 %v171
    %177 = vmatprep.subr.bf16.mxu0 0
    %178 = vmatpush1.bf16.msra.mxu0 0
    %179 = vmatprep.subr.bf16.mxu0 0
    %180 = vmatpush1.bf16.msra.mxu0 0
    %181 = vmatprep.subr.bf16.mxu0 0
    %182 = vmatpush1.bf16.msra.mxu0 0
    %183 = vmatprep.subr.bf16.mxu0 0
    %184 = vmatpush1.bf16.msra.mxu0 0
    %185 = vmatprep.subr.bf16.mxu0 0
    %186 = vmatpush1.bf16.msra.mxu0 0
    %187 = vmatprep.subr.bf16.mxu0 0
    %188 = vmatpush1.bf16.msra.mxu0 0
    %189 = vmatprep.subr.bf16.mxu0 0
    %190 = vmatpush1.bf16.msra.mxu0 0
    %191 = vmatprep.subr.bf16.mxu0 0
    %192 = vmatpush1.bf16.msra.mxu0 0
    %193 = vmatprep.subr.bf16.mxu0 0
    %194 = vmatpush1.bf16.msra.mxu0 0
    %195 = vmatprep.subr.bf16.mxu0 0
    %196 = vmatpush1.bf16.msra.mxu0 0
    %197 = vmatprep.subr.bf16.mxu0 0
    %198 = vmatpush1.bf16.msra.mxu0 0
    %199 = vmatprep.subr.bf16.mxu0 0
    %200 = vmatpush1.bf16.msra.mxu0 0
    %201 = vmatprep.subr.bf16.mxu0 0
    %202 = vmatpush1.bf16.msra.mxu0 0
    %203 = vmatprep.subr.bf16.mxu0 0
    %204 = vmatpush1.bf16.msra.mxu0 0
    %205 = vmatprep.mubr.bf16.mxu0 0
    %206 = vmatmul.mubr.bf16.gmra.mrb[0].mxu0 %v164
    %v207 = vpop.f32.mrb[0].mxu0
    %v208 = vadd.f32 %v142, %v207
    %v209 = vpop.f32.mrb[0].mxu0
    %v210 = vpop.f32.mrb[0].mxu0
    %v211 = vadd.f32 %v147, %v210
    %v212 = vpop.f32.mrb[0].mxu0
    %213 = vmatprep.mubr.bf16.mxu0 0
    %214 = vmatmul.mubr.bf16.gmra.mrb[0].mxu0 %v167
    %v215 = vpop.f32.mrb[0].mxu0
    %v216 = vadd.f32 %v152, %v215
    %v217 = vpop.f32.mrb[0].mxu0
    %v218 = vpop.f32.mrb[0].mxu0
    %v219 = vpop.f32.mrb[0].mxu0
    %220 = vdwg.mxu0
    %v221 = vmax.f32 %v208, 0.0
    %v222 = vmax.f32 %v211, 0.0
    %v223 = vmax.f32 %v216, 0.0
    %v224 = vpack.c.bf16 %v222, %v221
    %v225 = vpack.c.bf16 %v223, %v223
    %227 = vset.pattern.permute.xlu0 0
    %228 = vperm.xlu0 %227, %v41
    %v229 = vpop.permute.xlu0 %228
    %v232 = vsel %vm162, %v34, 0
    %v235 = vsel %vm169, %v225, 0
    %237 = vmatprep.subr.bf16.mxu0 0
    %238 = vmatpush1.bf16.msra.mxu0 %v224
    %239 = vmatprep.subr.bf16.mxu0 0
    %240 = vmatpush1.bf16.msra.mxu0 %v235
    %241 = vmatprep.subr.bf16.mxu0 0
    %242 = vmatpush1.bf16.msra.mxu0 0
    %243 = vmatprep.subr.bf16.mxu0 0
    %244 = vmatpush1.bf16.msra.mxu0 0
    %245 = vmatprep.subr.bf16.mxu0 0
    %246 = vmatpush1.bf16.msra.mxu0 0
    %247 = vmatprep.subr.bf16.mxu0 0
    %248 = vmatpush1.bf16.msra.mxu0 0
    %249 = vmatprep.subr.bf16.mxu0 0
    %250 = vmatpush1.bf16.msra.mxu0 0
    %251 = vmatprep.subr.bf16.mxu0 0
    %252 = vmatpush1.bf16.msra.mxu0 0
    %253 = vmatprep.subr.bf16.mxu0 0
    %254 = vmatpush1.bf16.msra.mxu0 0
    %255 = vmatprep.subr.bf16.mxu0 0
    %256 = vmatpush1.bf16.msra.mxu0 0
    %257 = vmatprep.subr.bf16.mxu0 0
    %258 = vmatpush1.bf16.msra.mxu0 0
    %259 = vmatprep.subr.bf16.mxu0 0
    %260 = vmatpush1.bf16.msra.mxu0 0
    %261 = vmatprep.subr.bf16.mxu0 0
    %262 = vmatpush1.bf16.msra.mxu0 0
    %263 = vmatprep.subr.bf16.mxu0 0
    %264 = vmatpush1.bf16.msra.mxu0 0
    %265 = vmatprep.subr.bf16.mxu0 0
    %266 = vmatpush1.bf16.msra.mxu0 0
    %267 = vmatprep.subr.bf16.mxu0 0
    %268 = vmatpush1.bf16.msra.mxu0 0
    %269 = vmatprep.mubr.bf16.mxu0 0
    %270 = vmatmul.mubr.bf16.gmra.mrb[0].mxu0 %v232
    %v271 = vpop.f32.mrb[0].mxu0
    %v272 = vadd.f32 %v229, %v271
    %v273 = vpop.f32.mrb[0].mxu0
    %v274 = vpop.f32.mrb[0].mxu0
    %v275 = vpop.f32.mrb[0].mxu0
    %276 = vdwg.mxu0
    %277 = vst [vmem:[#allocation2] sm:$0x3] %v272
    // Predicated region
    $region30: #{fcn_forward.1} parent=1 // pred_check
      _
    $region31: #{fcn_forward.1} parent=1 // pred_check_branch
      %279 = sbr.rel (0) target = $region33
    $region32: #{fcn_forward.1} parent=1 // pred_region
      %s281 = ssub.s32 32, 32
      %282 = vsyncadd [#allocation3], %s281
      %s284 = sshll.u32 [#allocation2], 4
      %s285 = int_to_ptr.vmem [resolvable:$true] %s284
      %287 = dma.vmem_to_hbm [thread:$0]  %s285, 32, %s7, [#allocation3]
    $region33: #{fcn_forward.1} parent=1 // pred_fallthru
      _
    // Predicated region
    $region34: #{fcn_forward.1} parent=1 // pred_check
      _
    $region35: #{fcn_forward.1} parent=1 // pred_check_branch
      %289 = sbr.rel (0) target = $region37
    $region36: #{fcn_forward.1} parent=1 // pred_region
      %290 = dma.done [#allocation3], 32
    $region37: #{fcn_forward.1} parent=1 // pred_fallthru
      _
    %291 = vsyncpa [#allocation3], 1

</llo_original>
